<compile_context>
chip_gen: v5e
topology: v5e:2x2
jax: 0.10.0
libtpu: 0.0.40
codegen_flags: <defaults>
</compile_context>

<pallas_src>
import functools

import jax
import jax.numpy as jnp
from jax.experimental import pallas as pl
from jax.experimental.pallas import tpu as pltpu


def _pad_kernel(x_ref, o_ref, *, pad_top, pad_left, h, w):
    # x_ref: (c_blk, H,  W)
    # o_ref: (c_blk, Th, Tw)
    c_blk, th, tw = o_ref.shape
    pad_bottom = th - pad_top - h
    pad_right = tw - pad_left - w
    dt = o_ref.dtype

    # Zero only the padding border (static slices; each output element is
    # stored exactly once — no full-tile temp, no dynamic_update_slice).
    if pad_top > 0:
        o_ref[:, 0:pad_top, :] = jnp.zeros((c_blk, pad_top, tw), dt)
    if pad_bottom > 0:
        o_ref[:, pad_top + h:th, :] = jnp.zeros((c_blk, pad_bottom, tw), dt)
    if pad_left > 0:
        o_ref[:, pad_top:pad_top + h, 0:pad_left] = jnp.zeros((c_blk, h, pad_left), dt)
    if pad_right > 0:
        o_ref[:, pad_top:pad_top + h, pad_left + w:tw] = jnp.zeros((c_blk, h, pad_right), dt)

    # Interior: single static slice store of the input tile.
    o_ref[:, pad_top:pad_top + h, pad_left:pad_left + w] = x_ref[...]


def _choose_plane_block(n_planes, h, w, th, tw, itemsize, budget_bytes):
    """Largest divisor of n_planes whose double-buffered in+out blocks fit budget."""
    per_plane = 2 * (h * w + th * tw) * itemsize  # x2 for double buffering
    max_blk = max(1, budget_bytes // max(per_plane, 1))
    c_blk = 1
    for d in range(1, n_planes + 1):
        if n_planes % d == 0 and d <= max_blk:
            c_blk = d
    return c_blk


def pad_image_to_target_size(image: jax.Array,
                             target_width: int = 1024,
                             target_height: int = 496) -> jax.Array:
    """Center-pad `image` (N, C, H, W) with zeros to (N, C, target_height, target_width)."""
    n, c, h, w = image.shape
    th, tw = target_height, target_width
    assert w <= tw and h <= th, "image larger than target"

    pad_left = (tw - w) // 2
    pad_top = (th - h) // 2

    # Collapse (N, C) into one plane axis (free reshape, contiguous layout).
    planes = n * c
    x3 = image.reshape(planes, h, w)
    itemsize = jnp.dtype(image.dtype).itemsize

    # Conservative block budget (~24 MiB double-buffered) works on v5e/v6e/v7x
    # with the 32 MiB scoped VMEM limit requested below.
    c_blk = _choose_plane_block(planes, h, w, th, tw, itemsize,
                                budget_bytes=24 * 1024 * 1024)
    grid = (planes // c_blk,)

    kernel = functools.partial(_pad_kernel, pad_top=pad_top, pad_left=pad_left,
                               h=h, w=w)

    out3 = pl.pallas_call(
        kernel,
        out_shape=jax.ShapeDtypeStruct((planes, th, tw), image.dtype),
        grid_spec=pltpu.PrefetchScalarGridSpec(
            num_scalar_prefetch=0,
            grid=grid,
            in_specs=[
                # Last two dims equal the full array extents -> (8,128) rule ok.
                pl.BlockSpec((c_blk, h, w), lambda i: (i, 0, 0)),
            ],
            out_specs=pl.BlockSpec((c_blk, th, tw), lambda i: (i, 0, 0)),
        ),
        compiler_params=pltpu.CompilerParams(
            dimension_semantics=("parallel",),
            vmem_limit_bytes=32 * 1024 * 1024,
        ),
        cost_estimate=pl.CostEstimate(
            flops=0,
            transcendentals=0,
            bytes_accessed=planes * (h * w + th * tw) * itemsize,
        ),
    )(x3)

    return out3.reshape(n, c, th, tw)


def _reference(image, target_width, target_height):
    n, c, h, w = image.shape
    pad_left = (target_width - w) // 2
    pad_right = target_width - w - pad_left
    pad_top = (target_height - h) // 2
    pad_bottom = target_height - h - pad_top
    return jnp.pad(image,
                   ((0, 0), (0, 0), (pad_top, pad_bottom), (pad_left, pad_right)),
                   mode="constant", constant_values=0)


if __name__ == "__main__":
    key = jax.random.PRNGKey(0)
    # Small shapes consistent with the module (an NCHW image tensor).
    N, C, H, W = 2, 3, 16, 24
    target_w, target_h = 64, 40

    x = jax.random.uniform(key, (N, C, H, W), dtype=jnp.float32)

    y = pad_image_to_target_size(x, target_width=target_w, target_height=target_h)
    y = jax.block_until_ready(y)

    y_ref = _reference(x, target_w, target_h)
    assert y.shape == (N, C, target_h, target_w), y.shape
    assert jnp.allclose(y, y_ref), "mismatch vs reference zero-pad"

    # Also exercise the no-pad / odd-pad path with different plane blocking.
    x2 = jax.random.uniform(jax.random.PRNGKey(1), (1, 1, 40, 64), dtype=jnp.float32)
    y2 = jax.block_until_ready(pad_image_to_target_size(x2, 64, 40))
    assert jnp.allclose(y2, x2), "identity-pad case mismatch"

    print("KERNEL_OK")
</pallas_src>

<mosaic_0001>
module attributes {stable_mosaic.version = 11 : i64} {
  func.func @_pad_kernel(%arg0: i32, %arg1: memref<6x16x24xf32, #tpu.memory_space<vmem>>, %arg2: memref<6x40x64xf32, #tpu.memory_space<vmem>>) attributes {dimension_semantics = [#tpu.dimension_semantics<parallel>], iteration_bounds = array<i64: 1>, scalar_prefetch = 0 : i64, scratch_operands = 0 : i64, tpu.core_type = #tpu.core_type<tc>, window_params = [{transform_indices = @transform_0, window_bounds = array<i64: 6, 16, 24>}, {transform_indices = @transform_1, window_bounds = array<i64: 6, 40, 64>}]} {
    %cst = arith.constant 0.000000e+00 : f32
    %0 = vector.broadcast %cst : f32 to vector<6x12x64xf32>
    %c0 = arith.constant 0 : index
    %c0_0 = arith.constant 0 : index
    %c0_1 = arith.constant 0 : index
    %1 = vector.load %arg2[%c0, %c0_0, %c0_1] : memref<6x40x64xf32, #tpu.memory_space<vmem>>, vector<6x12x64xf32>
    tpu.vector_store %arg2[%c0, %c0_0, %c0_1], %0 {strides = array<i32>} : memref<6x40x64xf32, #tpu.memory_space<vmem>>, vector<6x12x64xf32>,
    %cst_2 = arith.constant 0.000000e+00 : f32
    %2 = vector.broadcast %cst_2 : f32 to vector<6x12x64xf32>
    %c0_3 = arith.constant 0 : index
    %c28 = arith.constant 28 : index
    %c0_4 = arith.constant 0 : index
    %3 = vector.load %arg2[%c0_3, %c28, %c0_4] : memref<6x40x64xf32, #tpu.memory_space<vmem>>, vector<6x12x64xf32>
    tpu.vector_store %arg2[%c0_3, %c28, %c0_4], %2 {strides = array<i32>} : memref<6x40x64xf32, #tpu.memory_space<vmem>>, vector<6x12x64xf32>,
    %cst_5 = arith.constant 0.000000e+00 : f32
    %4 = vector.broadcast %cst_5 : f32 to vector<6x16x20xf32>
    %c0_6 = arith.constant 0 : index
    %c12 = arith.constant 12 : index
    %c0_7 = arith.constant 0 : index
    %5 = vector.load %arg2[%c0_6, %c12, %c0_7] : memref<6x40x64xf32, #tpu.memory_space<vmem>>, vector<6x16x20xf32>
    tpu.vector_store %arg2[%c0_6, %c12, %c0_7], %4 {strides = array<i32>} : memref<6x40x64xf32, #tpu.memory_space<vmem>>, vector<6x16x20xf32>,
    %cst_8 = arith.constant 0.000000e+00 : f32
    %6 = vector.broadcast %cst_8 : f32 to vector<6x16x20xf32>
    %c0_9 = arith.constant 0 : index
    %c12_10 = arith.constant 12 : index
    %c44 = arith.constant 44 : index
    %7 = vector.load %arg2[%c0_9, %c12_10, %c44] : memref<6x40x64xf32, #tpu.memory_space<vmem>>, vector<6x16x20xf32>
    tpu.vector_store %arg2[%c0_9, %c12_10, %c44], %6 {strides = array<i32>} : memref<6x40x64xf32, #tpu.memory_space<vmem>>, vector<6x16x20xf32>,
    %c0_11 = arith.constant 0 : index
    %c0_12 = arith.constant 0 : index
    %c0_13 = arith.constant 0 : index
    %8 = vector.load %arg1[%c0_11, %c0_12, %c0_13] : memref<6x16x24xf32, #tpu.memory_space<vmem>>, vector<6x16x24xf32>
    %c0_14 = arith.constant 0 : index
    %c12_15 = arith.constant 12 : index
    %c20 = arith.constant 20 : index
    %9 = vector.load %arg2[%c0_14, %c12_15, %c20] : memref<6x40x64xf32, #tpu.memory_space<vmem>>, vector<6x16x24xf32>
    tpu.vector_store %arg2[%c0_14, %c12_15, %c20], %8 {strides = array<i32>} : memref<6x40x64xf32, #tpu.memory_space<vmem>>, vector<6x16x24xf32>,
    return
  }
  func.func @transform_0(%arg0: i32) -> (i32, i32, i32) {
    %c0_i32 = arith.constant 0 : i32
    %c0_i32_0 = arith.constant 0 : i32
    %c0_i32_1 = arith.constant 0 : i32
    return %arg0, %c0_i32, %c0_i32_0 : i32, i32, i32
  }
  func.func @transform_1(%arg0: i32) -> (i32, i32, i32) {
    %c0_i32 = arith.constant 0 : i32
    %c0_i32_0 = arith.constant 0 : i32
    %c0_i32_1 = arith.constant 0 : i32
    return %arg0, %c0_i32, %c0_i32_0 : i32, i32, i32
  }
}

</mosaic_0001>

<llo_original>
// kernel: tpu_custom_call.1
$region0: #{tpu_custom_call.1}
  #allocation0 [shape = 'u32[]', space=smem, size = 0x4, offset = 0x4, fixed_abs, tag = 'smem constant byte address 0x4 - core index']
  #allocation1 [shape = 'u32[72,128]{1,0:T(1,128)}', space=vmem, size = 0x9000, scoped, tag = 'internal scratch']
  %s0 = inlined_call_operand.hbm [shape: f32[6,16,24], index: 0, kind: input, shape index: {}]
  %s1 = inlined_call_operand.hbm [shape: f32[6,40,64], index: 1, kind: output, shape index: {}]
  %s2 = sld [smem:[#allocation0]]
  $region18: #{tpu_custom_call.1} parent=0
    _
  %s4 = ssub.s32 1, %s2
  %s5 = scalar_select 0, %s4, %s2
  $region1: #{tpu_custom_call.1} parent=0
    #allocation2 [shape = 'u8[49152]{0}', space=vmem, size = 0xc000, scoped, tag = 'input window, operand 0, single buffered']
    #allocation3 [shape = 's32[1]{0}', space=sflag, size = 0x4, scoped, tag = 'scoped memory for tpu_custom_call.1']
    #allocation4 [shape = 's32[1]{0}', space=sflag, size = 0x4, scoped, tag = 'scoped memory for tpu_custom_call.1']
    #allocation5 [shape = 'u8[122880]{0}', space=vmem, size = 0x1e000, scoped, tag = 'output window, operand 0, single buffered']
    %6 = vsyncpa [#allocation3], 0
    %7 = vsyncpa [#allocation4], 0
    // Predicated region
    $region2: #{tpu_custom_call.1} parent=1 // pred_check
      _
    $region3: #{tpu_custom_call.1} parent=1 // pred_check_branch
      %9 = sbr.rel (0) target = $region5
    $region4: #{tpu_custom_call.1} parent=1 // pred_region
      %11 = vsyncadd [#allocation3], 0
      %s12 = sshll.u32 %s0, 4
      %s13 = int_to_ptr.hbm [resolvable:$true] %s12
      %s14 = sshll.u32 [#allocation2], 4
      %s15 = int_to_ptr.vmem [resolvable:$true] %s14
      %20 = dma.hbm_to_vmem [thread:$0]  %s13, 1536, %s15, [#allocation3], 128, 128, 8
    $region5: #{tpu_custom_call.1} parent=1 // pred_fallthru
      _
    // Predicated region
    $region6: #{tpu_custom_call.1} parent=1 // pred_check
      _
    $region7: #{tpu_custom_call.1} parent=1 // pred_check_branch
      %22 = sbr.rel (0) target = $region9
    $region8: #{tpu_custom_call.1} parent=1 // pred_region
      %24 = dma.done [#allocation3], 1536
    $region9: #{tpu_custom_call.1} parent=1 // pred_fallthru
      _
    %vm25 = vcmask 523264
    %26 = vst.msk [vmem:[#allocation5] sm:$0xff] %vm25, 0.0
    %vm27 = vcmask 519168
    %28 = vst.msk [vmem:[#allocation5 + $0x8] sm:$0xf] %vm27, 0.0
    %29 = vst.msk [vmem:[#allocation5 + $0x28] sm:$0xff] %vm25, 0.0
    %30 = vst.msk [vmem:[#allocation5 + $0x30] sm:$0xf] %vm27, 0.0
    %31 = vst.msk [vmem:[#allocation5 + $0x50] sm:$0xff] %vm25, 0.0
    %32 = vst.msk [vmem:[#allocation5 + $0x58] sm:$0xf] %vm27, 0.0
    %33 = vst.msk [vmem:[#allocation5 + $0x78] sm:$0xff] %vm25, 0.0
    %34 = vst.msk [vmem:[#allocation5 + $0x80] sm:$0xf] %vm27, 0.0
    %35 = vst.msk [vmem:[#allocation5 + $0xa0] sm:$0xff] %vm25, 0.0
    %36 = vst.msk [vmem:[#allocation5 + $0xa8] sm:$0xf] %vm27, 0.0
    %37 = vst.msk [vmem:[#allocation5 + $0xc8] sm:$0xff] %vm25, 0.0
    %38 = vst.msk [vmem:[#allocation5 + $0xd0] sm:$0xf] %vm27, 0.0
    %39 = vst.msk [vmem:[#allocation5 + $0x1c] sm:$0xff] %vm25, 0.0
    %40 = vst.msk [vmem:[#allocation5 + $0x24] sm:$0xf] %vm27, 0.0
    %41 = vst.msk [vmem:[#allocation5 + $0x44] sm:$0xff] %vm25, 0.0
    %42 = vst.msk [vmem:[#allocation5 + $0x4c] sm:$0xf] %vm27, 0.0
    %43 = vst.msk [vmem:[#allocation5 + $0x6c] sm:$0xff] %vm25, 0.0
    %44 = vst.msk [vmem:[#allocation5 + $0x74] sm:$0xf] %vm27, 0.0
    %45 = vst.msk [vmem:[#allocation5 + $0x94] sm:$0xff] %vm25, 0.0
    %46 = vst.msk [vmem:[#allocation5 + $0x9c] sm:$0xf] %vm27, 0.0
    %47 = vst.msk [vmem:[#allocation5 + $0xbc] sm:$0xff] %vm25, 0.0
    %48 = vst.msk [vmem:[#allocation5 + $0xc4] sm:$0xf] %vm27, 0.0
    %49 = vst.msk [vmem:[#allocation5 + $0xe4] sm:$0xff] %vm25, 0.0
    %50 = vst.msk [vmem:[#allocation5 + $0xec] sm:$0xf] %vm27, 0.0
    %vm51 = vcmask 162816
    %52 = vst.msk [vmem:[#allocation5 + $0xc] sm:$0xff] %vm51, 0.0
    %53 = vst.msk [vmem:[#allocation5 + $0x14] sm:$0xff] %vm51, 0.0
    %54 = vst.msk [vmem:[#allocation5 + $0x34] sm:$0xff] %vm51, 0.0
    %55 = vst.msk [vmem:[#allocation5 + $0x3c] sm:$0xff] %vm51, 0.0
    %56 = vst.msk [vmem:[#allocation5 + $0x5c] sm:$0xff] %vm51, 0.0
    %57 = vst.msk [vmem:[#allocation5 + $0x64] sm:$0xff] %vm51, 0.0
    %58 = vst.msk [vmem:[#allocation5 + $0x84] sm:$0xff] %vm51, 0.0
    %59 = vst.msk [vmem:[#allocation5 + $0x8c] sm:$0xff] %vm51, 0.0
    %60 = vst.msk [vmem:[#allocation5 + $0xac] sm:$0xff] %vm51, 0.0
    %61 = vst.msk [vmem:[#allocation5 + $0xb4] sm:$0xff] %vm51, 0.0
    %62 = vst.msk [vmem:[#allocation5 + $0xd4] sm:$0xff] %vm51, 0.0
    %63 = vst.msk [vmem:[#allocation5 + $0xdc] sm:$0xff] %vm51, 0.0
    %vm64 = vcmask 523616
    %65 = vst.msk [vmem:[#allocation5 + $0xc] sm:$0xff] %vm64, 0.0
    %66 = vst.msk [vmem:[#allocation5 + $0x14] sm:$0xff] %vm64, 0.0
    %67 = vst.msk [vmem:[#allocation5 + $0x34] sm:$0xff] %vm64, 0.0
    %68 = vst.msk [vmem:[#allocation5 + $0x3c] sm:$0xff] %vm64, 0.0
    %69 = vst.msk [vmem:[#allocation5 + $0x5c] sm:$0xff] %vm64, 0.0
    %70 = vst.msk [vmem:[#allocation5 + $0x64] sm:$0xff] %vm64, 0.0
    %71 = vst.msk [vmem:[#allocation5 + $0x84] sm:$0xff] %vm64, 0.0
    %72 = vst.msk [vmem:[#allocation5 + $0x8c] sm:$0xff] %vm64, 0.0
    %73 = vst.msk [vmem:[#allocation5 + $0xac] sm:$0xff] %vm64, 0.0
    %74 = vst.msk [vmem:[#allocation5 + $0xb4] sm:$0xff] %vm64, 0.0
    %75 = vst.msk [vmem:[#allocation5 + $0xd4] sm:$0xff] %vm64, 0.0
    %76 = vst.msk [vmem:[#allocation5 + $0xdc] sm:$0xff] %vm64, 0.0
    %v77 = vld [vmem:[#allocation2] sm:$0xff]
    %v78 = vld [vmem:[#allocation2 + $0x8] sm:$0xff]
    %v79 = vld [vmem:[#allocation2 + $0x10] sm:$0xff]
    %v80 = vld [vmem:[#allocation2 + $0x18] sm:$0xff]
    %v81 = vld [vmem:[#allocation2 + $0x20] sm:$0xff]
    %v82 = vld [vmem:[#allocation2 + $0x28] sm:$0xff]
    %v83 = vld [vmem:[#allocation2 + $0x30] sm:$0xff]
    %v84 = vld [vmem:[#allocation2 + $0x38] sm:$0xff]
    %v85 = vld [vmem:[#allocation2 + $0x40] sm:$0xff]
    %v86 = vld [vmem:[#allocation2 + $0x48] sm:$0xff]
    %v87 = vld [vmem:[#allocation2 + $0x50] sm:$0xff]
    %v88 = vld [vmem:[#allocation2 + $0x58] sm:$0xff]
    %101 = vrot.lane.b32.xlu0 %v77, 20
    %v102 = vpop.permute.xlu0 %101
    %103 = vrot.lane.b32.xlu0 %v78, 20
    %v104 = vpop.permute.xlu0 %103
    %105 = vrot.lane.b32.xlu0 %v79, 20
    %v106 = vpop.permute.xlu0 %105
    %107 = vrot.lane.b32.xlu0 %v80, 20
    %v108 = vpop.permute.xlu0 %107
    %109 = vrot.lane.b32.xlu0 %v81, 20
    %v110 = vpop.permute.xlu0 %109
    %111 = vrot.lane.b32.xlu0 %v82, 20
    %v112 = vpop.permute.xlu0 %111
    %113 = vrot.lane.b32.xlu0 %v83, 20
    %v114 = vpop.permute.xlu0 %113
    %115 = vrot.lane.b32.xlu0 %v84, 20
    %v116 = vpop.permute.xlu0 %115
    %117 = vrot.lane.b32.xlu0 %v85, 20
    %v118 = vpop.permute.xlu0 %117
    %119 = vrot.lane.b32.xlu0 %v86, 20
    %v120 = vpop.permute.xlu0 %119
    %121 = vrot.lane.b32.xlu0 %v87, 20
    %v122 = vpop.permute.xlu0 %121
    %123 = vrot.lane.b32.xlu0 %v88, 20
    %v124 = vpop.permute.xlu0 %123
    %vm137 = vcmask 359584
    %138 = vst.msk [vmem:[#allocation5 + $0xc] sm:$0xff] %vm137, %v102
    %139 = vst.msk [vmem:[#allocation5 + $0x14] sm:$0xff] %vm137, %v104
    %140 = vst.msk [vmem:[#allocation5 + $0x34] sm:$0xff] %vm137, %v106
    %141 = vst.msk [vmem:[#allocation5 + $0x3c] sm:$0xff] %vm137, %v108
    %142 = vst.msk [vmem:[#allocation5 + $0x5c] sm:$0xff] %vm137, %v110
    %143 = vst.msk [vmem:[#allocation5 + $0x64] sm:$0xff] %vm137, %v112
    %144 = vst.msk [vmem:[#allocation5 + $0x84] sm:$0xff] %vm137, %v114
    %145 = vst.msk [vmem:[#allocation5 + $0x8c] sm:$0xff] %vm137, %v116
    %146 = vst.msk [vmem:[#allocation5 + $0xac] sm:$0xff] %vm137, %v118
    %147 = vst.msk [vmem:[#allocation5 + $0xb4] sm:$0xff] %vm137, %v120
    %148 = vst.msk [vmem:[#allocation5 + $0xd4] sm:$0xff] %vm137, %v122
    %149 = vst.msk [vmem:[#allocation5 + $0xdc] sm:$0xff] %vm137, %v124
    // Predicated region
    $region10: #{tpu_custom_call.1} parent=1 // pred_check
      _
    $region11: #{tpu_custom_call.1} parent=1 // pred_check_branch
      %151 = sbr.rel (0) target = $region13
    $region12: #{tpu_custom_call.1} parent=1 // pred_region
      %153 = vsyncadd [#allocation4], 0
      %s154 = sshll.u32 [#allocation5], 4
      %s155 = int_to_ptr.vmem [resolvable:$true] %s154
      %s156 = sshll.u32 %s1, 4
      %s157 = int_to_ptr.hbm [resolvable:$true] %s156
      %162 = dma.vmem_to_hbm [thread:$0]  %s155, 3840, %s157, [#allocation4], 128, 128, 8
    $region13: #{tpu_custom_call.1} parent=1 // pred_fallthru
      _
    // Predicated region
    $region14: #{tpu_custom_call.1} parent=1 // pred_check
      _
    $region15: #{tpu_custom_call.1} parent=1 // pred_check_branch
      %164 = sbr.rel (0) target = $region17
    $region16: #{tpu_custom_call.1} parent=1 // pred_region
      %166 = dma.done [#allocation4], 3840
    $region17: #{tpu_custom_call.1} parent=1 // pred_fallthru
      _
    %167 = vsyncpa [#allocation3], 1
    %168 = vsyncpa [#allocation4], 1

</llo_original>
